<compile_context>
chip_gen: v7x
topology: tpu7x:2x2x1
jax: 0.10.0
libtpu: 0.0.40
codegen_flags: <defaults>
</compile_context>

<pallas_src>
import jax
import jax.numpy as jnp
from jax import lax
from jax.experimental import pallas as pl
from jax.experimental.pallas import tpu as pltpu

SELU_ALPHA = 1.6732632423543772
SELU_SCALE = 1.0507009873554805


def _row_chunk(n):
    """Largest convenient row tile (multiple of 8) that divides n, else n."""
    for cand in (2048, 1024, 512, 256, 128, 64, 32, 16, 8):
        if n % cand == 0:
            return cand
    return n


# ----------------------------------------------------------------------------
# Kernel 1: hoisted input projection for both directions & all timesteps.
#   pregates[t*B+b, :] = sum_s x[s, t*B+b, :] @ W_ih[s] + bias     (f32 acc)
#   Column layout: [dir0: i f g o | dir1: i f g o]  (each 4H wide).
# ----------------------------------------------------------------------------
def _input_proj_kernel(x_ref, wih_ref, b_ref, out_ref):
    acc = jnp.dot(x_ref[0], wih_ref[0], preferred_element_type=jnp.float32)
    for s in range(1, x_ref.shape[0]):            # static (stacked input parts)
        acc = acc + jnp.dot(x_ref[s], wih_ref[s],
                            preferred_element_type=jnp.float32)
    out_ref[...] = acc + b_ref[...]               # bias added once, not per step


def _input_projection(x_stacked, wih, bias):
    S, TB, Dpart = x_stacked.shape
    two_g = wih.shape[-1]
    chunk = _row_chunk(TB)
    return pl.pallas_call(
        _input_proj_kernel,
        out_shape=jax.ShapeDtypeStruct((TB, two_g), jnp.float32),
        grid_spec=pltpu.PrefetchScalarGridSpec(
            num_scalar_prefetch=0,
            grid=(TB // chunk,),
            in_specs=[
                pl.BlockSpec((S, chunk, Dpart), lambda i: (0, i, 0)),
                pl.BlockSpec((S, Dpart, two_g), lambda i: (0, 0, 0)),
                pl.BlockSpec((1, two_g), lambda i: (0, 0)),
            ],
            out_specs=pl.BlockSpec((chunk, two_g), lambda i: (i, 0)),
        ),
        compiler_params=pltpu.CompilerParams(dimension_semantics=("parallel",)),
    )(x_stacked, wih, bias)


# ----------------------------------------------------------------------------
# Kernel 2: per-direction recurrence.  grid=(2,) over directions ("parallel");
# time runs in an in-kernel fori_loop with h/c resident in VMEM scratch.
# Backward direction walks tt = T-1-t (index arithmetic, no HBM reversal).
# ----------------------------------------------------------------------------
def _bilstm_rec_kernel(pg_ref, whh_ref, out_ref, h_sc, c_sc):
    d = pl.program_id(0)                     # 0 = forward, 1 = backward
    T = pg_ref.shape[0]
    H = h_sc.shape[-1]

    h_sc[...] = jnp.zeros_like(h_sc)         # per-direction state reset
    c_sc[...] = jnp.zeros_like(c_sc)
    whh = whh_ref[...]                       # (H, 4H), loop-invariant (hoisted)

    def step(t, carry):
        tt = jnp.where(d == 0, t, T - 1 - t)
        gates = pg_ref[tt] + jnp.dot(h_sc[...].astype(whh.dtype), whh,
                                     preferred_element_type=jnp.float32)
        i = jax.nn.sigmoid(gates[:, 0 * H:1 * H])
        f = jax.nn.sigmoid(gates[:, 1 * H:2 * H])
        g = jnp.tanh(gates[:, 2 * H:3 * H])
        o = jax.nn.sigmoid(gates[:, 3 * H:4 * H])
        c = f * c_sc[...] + i * g
        h = o * jnp.tanh(c)
        c_sc[...] = c
        h_sc[...] = h
        out_ref[tt] = h.astype(out_ref.dtype)
        return carry

    lax.fori_loop(0, T, step, 0, unroll=True)


def _bilstm_recurrence(pregates_tb, whh, out_dtype):
    T, B, two_g = pregates_tb.shape
    G = two_g // 2
    H = G // 4
    return pl.pallas_call(
        _bilstm_rec_kernel,
        out_shape=jax.ShapeDtypeStruct((2, T, B, H), out_dtype),
        grid_spec=pltpu.PrefetchScalarGridSpec(
            num_scalar_prefetch=0,
            grid=(2,),
            in_specs=[
                # each direction gets its own lane-aligned 4H pre-gate slab
                pl.BlockSpec((T, B, G), lambda d: (0, 0, d)),
                pl.BlockSpec((pl.Squeezed(), H, G), lambda d: (d, 0, 0)),
            ],
            out_specs=pl.BlockSpec((pl.Squeezed(), T, B, H),
                                   lambda d: (d, 0, 0, 0)),
            scratch_shapes=[
                pltpu.VMEM((B, H), jnp.float32),   # h
                pltpu.VMEM((B, H), jnp.float32),   # c
            ],
        ),
        compiler_params=pltpu.CompilerParams(dimension_semantics=("parallel",)),
    )(pregates_tb, whh)


# ----------------------------------------------------------------------------
# Kernel 3: tiled epilogue — SELU then mean of the two direction slabs.
# (Directions are stacked on a leading axis, so the average is a lane-aligned
#  add; no sub-128-lane :H / H: slicing.)
# ----------------------------------------------------------------------------
def _selu_avg_kernel(y_ref, o_ref):
    y = y_ref[...].astype(jnp.float32)
    s = SELU_SCALE * jnp.where(y > 0, y, SELU_ALPHA * (jnp.exp(y) - 1.0))
    o_ref[...] = ((s[0] + s[1]) * 0.5).astype(o_ref.dtype)


def selu_avg(y_stacked, out_dtype):
    _, TB, H = y_stacked.shape
    chunk = _row_chunk(TB)
    return pl.pallas_call(
        _selu_avg_kernel,
        out_shape=jax.ShapeDtypeStruct((TB, H), out_dtype),
        grid_spec=pltpu.PrefetchScalarGridSpec(
            num_scalar_prefetch=0,
            grid=(TB // chunk,),
            in_specs=[pl.BlockSpec((2, chunk, H), lambda i: (0, i, 0))],
            out_specs=pl.BlockSpec((chunk, H), lambda i: (i, 0)),
        ),
        compiler_params=pltpu.CompilerParams(dimension_semantics=("parallel",)),
    )(y_stacked)


# ----------------------------------------------------------------------------
# Parameters: raw PyTorch-layout init + packing into kernel layouts.
# ----------------------------------------------------------------------------
def init_params(key, input_size, hidden_size, num_layers):
    H = hidden_size
    k = 1.0 / float(hidden_size) ** 0.5
    layers = []
    for layer in range(num_layers):
        din = input_size if layer == 0 else 2 * H
        dirs = []
        for _ in range(2):
            key, k0, k1, k2, k3 = jax.random.split(key, 5)
            dirs.append(dict(
                w_ih=jax.random.uniform(k0, (4 * H, din), jnp.float32, -k, k),
                w_hh=jax.random.uniform(k1, (4 * H, H), jnp.float32, -k, k),
                b_ih=jax.random.uniform(k2, (4 * H,), jnp.float32, -k, k),
                b_hh=jax.random.uniform(k3, (4 * H,), jnp.float32, -k, k),
            ))
        layers.append(dirs)
    return layers


def pack_params(raw, input_size, hidden_size, dot_dtype=jnp.float32):
    """wih: (S, Dpart, 8H) fused over directions; whh: (2, H, 4H); bias: (1, 8H)."""
    H = hidden_size
    packed = []
    for layer_idx, dirs in enumerate(raw):
        parts = [(0, input_size)] if layer_idx == 0 else [(0, H), (H, H)]
        wih = jnp.stack([
            jnp.concatenate([d["w_ih"][:, s:s + w].T for d in dirs], axis=1)
            for (s, w) in parts
        ], axis=0).astype(dot_dtype)
        whh = jnp.stack([d["w_hh"].T for d in dirs], axis=0).astype(dot_dtype)
        bias = jnp.concatenate([(d["b_ih"] + d["b_hh"]) for d in dirs])[None, :]
        packed.append((wih, whh, bias.astype(jnp.float32)))
    return packed


# ----------------------------------------------------------------------------
# Full forward.
# ----------------------------------------------------------------------------
def bidirectional_lstm_forward(x, packed_params, hidden_size):
    B, T = x.shape[0], x.shape[1]
    H = hidden_size
    out_dtype = x.dtype
    dot_dtype = packed_params[0][0].dtype

    x = x.reshape(B, T, -1)
    # time-major rows (row index = t*B + b), stacked input-part axis S (=1).
    h = jnp.transpose(x, (1, 0, 2)).reshape(1, T * B, -1).astype(dot_dtype)

    for (wih, whh, bias) in packed_params:
        pg = _input_projection(h, wih, bias)          # (T*B, 8H) f32, one big GEMM
        pg = pg.reshape(T, B, -1)                     # free (contiguous) reshape
        out = _bilstm_recurrence(pg, whh, dot_dtype)  # (2, T, B, H), fwd/bwd stacked
        h = out.reshape(2, T * B, H)                  # stacked layout, no concat

    y = selu_avg(h, out_dtype)                        # (T*B, H)
    y = jnp.transpose(y.reshape(T, B, H), (1, 0, 2))  # (B, T, H)
    return y.reshape(B, T, H // 2, 2)


# ----------------------------------------------------------------------------
# Pure-JAX reference (lax.scan) for a sanity check.
# ----------------------------------------------------------------------------
def _ref_direction(x_tbd, p):
    H = p["w_hh"].shape[1]
    B = x_tbd.shape[1]
    w_ih, w_hh = p["w_ih"].T, p["w_hh"].T
    b = p["b_ih"] + p["b_hh"]

    def step(carry, x_t):
        hh, cc = carry
        gates = x_t @ w_ih + hh @ w_hh + b
        i = jax.nn.sigmoid(gates[:, :H])
        f = jax.nn.sigmoid(gates[:, H:2 * H])
        g = jnp.tanh(gates[:, 2 * H:3 * H])
        o = jax.nn.sigmoid(gates[:, 3 * H:])
        cc = f * cc + i * g
        hh = o * jnp.tanh(cc)
        return (hh, cc), hh

    init = (jnp.zeros((B, H), jnp.float32), jnp.zeros((B, H), jnp.float32))
    _, hs = lax.scan(step, init, x_tbd)
    return hs


def ref_forward(x, raw_params, hidden_size):
    B, T = x.shape[0], x.shape[1]
    x = x.reshape(B, T, -1)
    h = jnp.transpose(x, (1, 0, 2))
    for dirs in raw_params:
        out_f = _ref_direction(h, dirs[0])
        out_b = _ref_direction(h[::-1], dirs[1])[::-1]
        h = jnp.concatenate([out_f, out_b], axis=-1)
    out = jnp.transpose(h, (1, 0, 2))
    out = SELU_SCALE * jnp.where(out > 0, out, SELU_ALPHA * (jnp.exp(out) - 1.0))
    H = hidden_size
    out = (out[:, :, :H] + out[:, :, H:]) * 0.5
    return out.reshape(B, T, H // 2, 2)


if __name__ == "__main__":
    key = jax.random.PRNGKey(0)
    k_x, k_p = jax.random.split(key)

    B, T = 2, 8
    feat = (4, 8)                       # trailing feature dims (flattened to 32)
    input_size = feat[0] * feat[1]      # 32
    hidden_size = 32
    num_layers = 2

    x = jax.random.normal(k_x, (B, T) + feat, dtype=jnp.float32)
    raw_params = init_params(k_p, input_size, hidden_size, num_layers)
    ref = jax.block_until_ready(ref_forward(x, raw_params, hidden_size))

    # float32 matmul-operand path: exact check vs. lax.scan reference.
    packed_f32 = pack_params(raw_params, input_size, hidden_size, jnp.float32)
    out = jax.block_until_ready(
        bidirectional_lstm_forward(x, packed_f32, hidden_size))
    assert out.shape == (B, T, hidden_size // 2, 2), out.shape
    assert jnp.allclose(out, ref, rtol=1e-4, atol=1e-4), "f32 mismatch vs reference"

    # bf16 matmul operands (f32 accumulation, f32 gate math) for v6e/v7x MXU.
    packed_bf16 = pack_params(raw_params, input_size, hidden_size, jnp.bfloat16)
    out_bf16 = jax.block_until_ready(
        bidirectional_lstm_forward(x, packed_bf16, hidden_size))
    assert out_bf16.shape == out.shape
    assert float(jnp.max(jnp.abs(out_bf16.astype(jnp.float32) - ref))) < 0.1, \
        "bf16 path diverged from reference"

    print("KERNEL_OK")
</pallas_src>

<mosaic_0001>
module attributes {stable_mosaic.version = 11 : i64} {
  func.func @_input_proj_kernel(%arg0: i32, %arg1: memref<1x16x32xf32, #tpu.memory_space<vmem>>, %arg2: memref<1x32x256xf32, #tpu.memory_space<vmem>>, %arg3: memref<1x256xf32, #tpu.memory_space<vmem>>, %arg4: memref<16x256xf32, #tpu.memory_space<vmem>>) attributes {dimension_semantics = [#tpu.dimension_semantics<parallel>], iteration_bounds = array<i64: 1>, scalar_prefetch = 0 : i64, scratch_operands = 0 : i64, tpu.core_type = #tpu.core_type<tc>, window_params = [{transform_indices = @transform_0, window_bounds = array<i64: 1, 16, 32>}, {pipeline_mode = #tpu.pipeline_mode<synchronous>, transform_indices = @transform_1, window_bounds = array<i64: 1, 32, 256>}, {pipeline_mode = #tpu.pipeline_mode<synchronous>, transform_indices = @transform_2, window_bounds = array<i64: 1, 256>}, {transform_indices = @transform_3, window_bounds = array<i64: 16, 256>}]} {
    %c0 = arith.constant 0 : index
    %c0_0 = arith.constant 0 : index
    %c0_1 = arith.constant 0 : index
    %0 = vector.load %arg1[%c0, %c0_0, %c0_1] : memref<1x16x32xf32, #tpu.memory_space<vmem>>, vector<1x16x32xf32>
    %1 = vector.shape_cast %0 : vector<1x16x32xf32> to vector<16x32xf32>
    %c0_2 = arith.constant 0 : index
    %c0_3 = arith.constant 0 : index
    %c0_4 = arith.constant 0 : index
    %2 = vector.load %arg2[%c0_2, %c0_3, %c0_4] : memref<1x32x256xf32, #tpu.memory_space<vmem>>, vector<1x32x256xf32>
    %3 = vector.shape_cast %2 : vector<1x32x256xf32> to vector<32x256xf32>
    %cst = arith.constant dense<0.000000e+00> : vector<16x256xf32>
    %4 = tpu.matmul %1, %3, %cst {dimension_numbers = #tpu.dot_dimension_numbers<[1], [0], [0], [1], [0, 0, 1, 1], [], []>} : vector<16x32xf32>, vector<32x256xf32>, vector<16x256xf32> -> vector<16x256xf32>
    %c0_5 = arith.constant 0 : index
    %c0_6 = arith.constant 0 : index
    %5 = vector.load %arg3[%c0_5, %c0_6] : memref<1x256xf32, #tpu.memory_space<vmem>>, vector<1x256xf32>
    %6 = vector.broadcast %5 : vector<1x256xf32> to vector<16x256xf32>
    %7 = arith.addf %4, %6 : vector<16x256xf32>
    %c0_7 = arith.constant 0 : index
    %c0_8 = arith.constant 0 : index
    %8 = vector.load %arg4[%c0_7, %c0_8] : memref<16x256xf32, #tpu.memory_space<vmem>>, vector<16x256xf32>
    tpu.vector_store %arg4[%c0_7, %c0_8], %7 {strides = array<i32>} : memref<16x256xf32, #tpu.memory_space<vmem>>, vector<16x256xf32>,
    return
  }
  func.func @transform_0(%arg0: i32) -> (i32, i32, i32) {
    %c0_i32 = arith.constant 0 : i32
    %c0_i32_0 = arith.constant 0 : i32
    %c0_i32_1 = arith.constant 0 : i32
    return %c0_i32, %arg0, %c0_i32_0 : i32, i32, i32
  }
  func.func @transform_1(%arg0: i32) -> (i32, i32, i32) {
    %c0_i32 = arith.constant 0 : i32
    %c0_i32_0 = arith.constant 0 : i32
    %c0_i32_1 = arith.constant 0 : i32
    %c0_i32_2 = arith.constant 0 : i32
    return %c0_i32, %c0_i32_0, %c0_i32_1 : i32, i32, i32
  }
  func.func @transform_2(%arg0: i32) -> (i32, i32) {
    %c0_i32 = arith.constant 0 : i32
    %c0_i32_0 = arith.constant 0 : i32
    %c0_i32_1 = arith.constant 0 : i32
    return %c0_i32, %c0_i32_0 : i32, i32
  }
  func.func @transform_3(%arg0: i32) -> (i32, i32) {
    %c0_i32 = arith.constant 0 : i32
    %c0_i32_0 = arith.constant 0 : i32
    return %arg0, %c0_i32 : i32, i32
  }
}

</mosaic_0001>

<llo_original>
// kernel: tpu_custom_call.1
$region0: #{tpu_custom_call.1}
  #allocation0 [shape = 'u32[]', space=smem, size = 0x4, offset = 0x4, fixed_abs, tag = 'smem constant byte address 0x4 - core index']
  #allocation1 [shape = 'u32[144,128]{1,0:T(1,128)}', space=vmem, size = 0x12000, scoped, tag = 'internal scratch']
  %s0 = inlined_call_operand.hbm [shape: f32[1,16,32], index: 0, kind: input, shape index: {}]
  %s1 = inlined_call_operand.hbm [shape: f32[1,32,256], index: 1, kind: input, shape index: {}]
  %s2 = inlined_call_operand.vmem [shape: f32[1,256], index: 2, kind: input, shape index: {}]
  %s3 = inlined_call_operand.hbm [shape: f32[16,256], index: 3, kind: output, shape index: {}]
  %s4 = sld [smem:[#allocation0]]
  $region30: #{tpu_custom_call.1} parent=0
    _
  %s6 = ssub.s32 1, %s4
  %s7 = scalar_select 0, %s6, %s4
  $region1: #{tpu_custom_call.1} parent=0
    #allocation2 [shape = 'u8[8192]{0}', space=vmem, size = 0x2000, scoped, tag = 'input window, operand 0, single buffered']
    #allocation3 [shape = 's32[1]{0}', space=sflag, size = 0x4, scoped, tag = 'scoped memory for tpu_custom_call.1']
    #allocation4 [shape = 's32[1]{0}', space=sflag, size = 0x4, scoped, tag = 'scoped memory for tpu_custom_call.1']
    #allocation5 [shape = 'u8[32768]{0}', space=vmem, size = 0x8000, scoped, tag = 'input window, operand 1, single buffered']
    #allocation6 [shape = 's32[1]{0}', space=sflag, size = 0x4, scoped, tag = 'scoped memory for tpu_custom_call.1']
    #allocation7 [shape = 'u8[16384]{0}', space=vmem, size = 0x4000, scoped, tag = 'output window, operand 0, single buffered']
    %8 = vsyncpa [#allocation3], 0
    %9 = vsyncpa [#allocation6], 0
    %10 = vsyncpa [#allocation4], 0
    // Predicated region
    $region2: #{tpu_custom_call.1} parent=1 // pred_check
      _
    $region3: #{tpu_custom_call.1} parent=1 // pred_check_branch
      %12 = sbr.rel (0) target = $region5
    $region4: #{tpu_custom_call.1} parent=1 // pred_region
      %s14 = ssub.s32 256, 256
      %15 = vsyncadd [#allocation3], %s14
      %s16 = sshll.u32 [#allocation2], 4
      %s17 = int_to_ptr.vmem [resolvable:$true] %s16
      %22 = dma.hbm_to_vmem [thread:$0]  %s0, 256, %s17, [#allocation3], 128, 128, 8
    $region5: #{tpu_custom_call.1} parent=1 // pred_fallthru
      _
    // Predicated region
    $region6: #{tpu_custom_call.1} parent=1 // pred_check
      _
    $region7: #{tpu_custom_call.1} parent=1 // pred_check_branch
      %24 = sbr.rel (0) target = $region9
    $region8: #{tpu_custom_call.1} parent=1 // pred_region
      %s26 = ssub.s32 1024, 1024
      %27 = vsyncadd [#allocation6], %s26
      %s28 = sshll.u32 [#allocation5], 4
      %s29 = int_to_ptr.vmem [resolvable:$true] %s28
      %34 = dma.hbm_to_vmem [thread:$0]  %s1, 1024, %s29, [#allocation6], 256, 256, 16
    $region9: #{tpu_custom_call.1} parent=1 // pred_fallthru
      _
    // Predicated region
    $region10: #{tpu_custom_call.1} parent=1 // pred_check
      _
    $region11: #{tpu_custom_call.1} parent=1 // pred_check_branch
      %36 = sbr.rel (0) target = $region13
    $region12: #{tpu_custom_call.1} parent=1 // pred_region
      _
    $region13: #{tpu_custom_call.1} parent=1 // pred_fallthru
      _
    // Predicated region
    $region14: #{tpu_custom_call.1} parent=1 // pred_check
      _
    $region15: #{tpu_custom_call.1} parent=1 // pred_check_branch
      %38 = sbr.rel (0) target = $region17
    $region16: #{tpu_custom_call.1} parent=1 // pred_region
      %39 = dma.done [#allocation3], 256
    $region17: #{tpu_custom_call.1} parent=1 // pred_fallthru
      _
    // Predicated region
    $region18: #{tpu_custom_call.1} parent=1 // pred_check
      _
    $region19: #{tpu_custom_call.1} parent=1 // pred_check_branch
      %41 = sbr.rel (0) target = $region21
    $region20: #{tpu_custom_call.1} parent=1 // pred_region
      %42 = dma.done [#allocation6], 1024
    $region21: #{tpu_custom_call.1} parent=1 // pred_fallthru
      _
    %v43 = vld [vmem:[#allocation2] sm:$0xff]
    %v44 = vld [vmem:[#allocation2 + $0x8] sm:$0xff]
    %v45 = vld [vmem:[#allocation5] sm:$0xff]
    %v46 = vld [vmem:[#allocation5 + $0x8] sm:$0xff]
    %v47 = vld [vmem:[#allocation5 + $0x10] sm:$0xff]
    %v48 = vld [vmem:[#allocation5 + $0x18] sm:$0xff]
    %v49 = vld [vmem:[#allocation5 + $0x20] sm:$0xff]
    %v50 = vld [vmem:[#allocation5 + $0x28] sm:$0xff]
    %v51 = vld [vmem:[#allocation5 + $0x30] sm:$0xff]
    %v52 = vld [vmem:[#allocation5 + $0x38] sm:$0xff]
    %v53 = vld [vmem:[%s2] sm:$0x3]
    %v55 = vlaneseq
    %v56 = vshrl.u32 %v55, 7
    %v57 = vsub.s32 0, %v56
    %v58 = vrot.slane %v53, %v57
    %v59 = vlaneseq
    %v60 = vshrl.u32 %v59, 7
    %v61 = vsub.s32 1, %v60
    %v62 = vrot.slane %v53, %v61
    %vm65 = vcmask 261120
    %v67 = vsel %vm65, %v43, 0
    %v70 = vsel %vm65, %v44, 0
    %72 = vmatprep.subr.mxu0 %v46
    %73 = vmatpush1.msra.mxu0 %v45
    %74 = vmatprep.subr.mxu0 %v48
    %75 = vmatpush1.msra.mxu0 %v47
    %76 = vmatprep.subr.mxu0 %v50
    %77 = vmatpush1.msra.mxu0 %v49
    %78 = vmatprep.subr.mxu0 %v52
    %79 = vmatpush1.msra.mxu0 %v51
    %80 = vmatprep.subr.mxu0 0.0
    %81 = vmatpush1.msra.mxu0 0.0
    %82 = vmatprep.subr.mxu0 0.0
    %83 = vmatpush1.msra.mxu0 0.0
    %84 = vmatprep.subr.mxu0 0.0
    %85 = vmatpush1.msra.mxu0 0.0
    %86 = vmatprep.subr.mxu0 0.0
    %87 = vmatpush1.msra.mxu0 0.0
    %88 = vmatprep.subr.mxu0 0.0
    %89 = vmatpush1.msra.mxu0 0.0
    %90 = vmatprep.subr.mxu0 0.0
    %91 = vmatpush1.msra.mxu0 0.0
    %92 = vmatprep.subr.mxu0 0.0
    %93 = vmatpush1.msra.mxu0 0.0
    %94 = vmatprep.subr.mxu0 0.0
    %95 = vmatpush1.msra.mxu0 0.0
    %96 = vmatprep.subr.mxu0 0.0
    %97 = vmatpush1.msra.mxu0 0.0
    %98 = vmatprep.subr.mxu0 0.0
    %99 = vmatpush1.msra.mxu0 0.0
    %100 = vmatprep.subr.mxu0 0.0
    %101 = vmatpush1.msra.mxu0 0.0
    %102 = vmatprep.subr.mxu0 0.0
    %103 = vmatpush1.msra.mxu0 0.0
    %104 = vmatprep.subr.mxu0 0.0
    %105 = vmatpush1.msra.mxu0 0.0
    %106 = vmatprep.subr.mxu0 0.0
    %107 = vmatpush1.msra.mxu0 0.0
    %108 = vmatprep.subr.mxu0 0.0
    %109 = vmatpush1.msra.mxu0 0.0
    %110 = vmatprep.subr.mxu0 0.0
    %111 = vmatpush1.msra.mxu0 0.0
    %112 = vmatprep.subr.mxu0 0.0
    %113 = vmatpush1.msra.mxu0 0.0
    %114 = vmatprep.subr.mxu0 0.0
    %115 = vmatpush1.msra.mxu0 0.0
    %116 = vmatprep.subr.mxu0 0.0
    %117 = vmatpush1.msra.mxu0 0.0
    %118 = vmatprep.subr.mxu0 0.0
    %119 = vmatpush1.msra.mxu0 0.0
    %120 = vmatprep.subr.mxu0 0.0
    %121 = vmatpush1.msra.mxu0 0.0
    %122 = vmatprep.subr.mxu0 0.0
    %123 = vmatpush1.msra.mxu0 0.0
    %124 = vmatprep.subr.mxu0 0.0
    %125 = vmatpush1.msra.mxu0 0.0
    %126 = vmatprep.subr.mxu0 0.0
    %127 = vmatpush1.msra.mxu0 0.0
    %128 = vmatprep.subr.mxu0 0.0
    %129 = vmatpush1.msra.mxu0 0.0
    %130 = vmatprep.subr.mxu0 0.0
    %131 = vmatpush1.msra.mxu0 0.0
    %132 = vmatprep.subr.mxu0 0.0
    %133 = vmatpush1.msra.mxu0 0.0
    %134 = vmatprep.subr.mxu0 0.0
    %135 = vmatpush1.msra.mxu0 0.0
    %136 = vmatprep.mubr.f32.mxu0 0.0
    %137 = vmatmul.mubr.f32.gmra.mrb[0].mxu0 %v67
    %v138 = vpop.f32.mrb[0].mxu0
    %v139 = vadd.f32 %v58, %v138
    %v140 = vpop.f32.mrb[0].mxu0
    %v141 = vadd.f32 %v62, %v140
    %142 = vmatprep.mubr.f32.mxu0 0.0
    %143 = vmatmul.mubr.f32.gmra.mrb[0].mxu0 %v70
    %v144 = vpop.f32.mrb[0].mxu0
    %v145 = vadd.f32 %v58, %v144
    %v146 = vpop.f32.mrb[0].mxu0
    %v147 = vadd.f32 %v62, %v146
    %148 = vdwg.mxu0
    %149 = vst [vmem:[#allocation7] sm:$0xff] %v139
    %150 = vst [vmem:[#allocation7 + $0x8] sm:$0xff] %v141
    %151 = vst [vmem:[#allocation7 + $0x10] sm:$0xff] %v145
    %152 = vst [vmem:[#allocation7 + $0x18] sm:$0xff] %v147
    // Predicated region
    $region22: #{tpu_custom_call.1} parent=1 // pred_check
      _
    $region23: #{tpu_custom_call.1} parent=1 // pred_check_branch
      %154 = sbr.rel (0) target = $region25
    $region24: #{tpu_custom_call.1} parent=1 // pred_region
      %s156 = ssub.s32 512, 512
      %157 = vsyncadd [#allocation4], %s156
      %s158 = sshll.u32 [#allocation7], 4
      %s159 = int_to_ptr.vmem [resolvable:$true] %s158
      %164 = dma.vmem_to_hbm [thread:$0]  %s159, 512, %s3, [#allocation4], 256, 256, 16
    $region25: #{tpu_custom_call.1} parent=1 // pred_fallthru
      _
    // Predicated region
    $region26: #{tpu_custom_call.1} parent=1 // pred_check
      _
    $region27: #{tpu_custom_call.1} parent=1 // pred_check_branch
      %166 = sbr.rel (0) target = $region29
    $region28: #{tpu_custom_call.1} parent=1 // pred_region
      %167 = dma.done [#allocation4], 512
    $region29: #{tpu_custom_call.1} parent=1 // pred_fallthru
      _
    %168 = vsyncpa [#allocation3], 1
    %169 = vsyncpa [#allocation6], 1
    %170 = vsyncpa [#allocation4], 1

</llo_original>
